<compile_context>
chip_gen: v6e
topology: v6e:2x2x1
jax: 0.10.0
libtpu: 0.0.40
codegen_flags: <defaults>
</compile_context>

<pallas_src>
import math

import jax
import jax.numpy as jnp
from jax.experimental import pallas as pl
from jax.experimental.pallas import tpu as pltpu

_GELU_C = 0.7978845608028654        # sqrt(2/pi)
_GELU_C2 = _GELU_C * 0.044715       # folded cubic coefficient


def _round_up(v, m):
    return (v + m - 1) // m * m


# --------------------------------------------------------------- kernels ----
def _ffn_partial(x_ref, w1_ref, b1_ref, w2_ref):
    """GELU(x @ W1_tile + b1_tile) @ W2_tile with f32 accumulation on the MXU."""
    h = jnp.dot(x_ref[...], w1_ref[...], preferred_element_type=jnp.float32)
    h = h + b1_ref[...].astype(jnp.float32)
    h2 = h * h
    # tanh(C*(h + 0.044715*h^3)) == tanh(h*(C + C2*h2)) with C2 = C*0.044715
    g = 0.5 * h * (1.0 + jnp.tanh(h * (_GELU_C + _GELU_C2 * h2)))
    return jnp.dot(g.astype(w2_ref.dtype), w2_ref[...],
                   preferred_element_type=jnp.float32)


def _ffn_kernel_f32_out(x_ref, w1_ref, b1_ref, w2_ref, b2_ref, o_ref):
    """f32 output: accumulate directly into the resident output block (no scratch)."""
    j = pl.program_id(1)

    @pl.when(j == 0)
    def _():
        o_ref[...] = jnp.zeros_like(o_ref)

    o_ref[...] += _ffn_partial(x_ref, w1_ref, b1_ref, w2_ref)

    @pl.when(j == pl.num_programs(1) - 1)
    def _():
        o_ref[...] += b2_ref[...].astype(jnp.float32)


def _ffn_kernel_acc(x_ref, w1_ref, b1_ref, w2_ref, b2_ref, o_ref, acc_ref):
    """Narrow output dtype: accumulate in an f32 scratch, cast at finalize."""
    j = pl.program_id(1)

    @pl.when(j == 0)
    def _():
        acc_ref[...] = jnp.zeros_like(acc_ref)

    acc_ref[...] += _ffn_partial(x_ref, w1_ref, b1_ref, w2_ref)

    @pl.when(j == pl.num_programs(1) - 1)
    def _():
        o_ref[...] = (acc_ref[...] + b2_ref[...].astype(jnp.float32)).astype(o_ref.dtype)


# ------------------------------------------------------ chip-aware sizing ----
def _chip_defaults():
    """Return (vmem_limit_bytes, tm_default, th_default, n_tensorcores)."""
    kind = ""
    try:
        kind = jax.devices()[0].device_kind.lower()
    except Exception:
        pass
    phys_vmem = None
    try:
        phys_vmem = int(pltpu.get_tpu_info().vmem_capacity_bytes)
    except Exception:
        phys_vmem = None
    is_v7 = "7" in kind
    is_v6 = "v6" in kind or "6e" in kind
    if phys_vmem is None:
        phys_vmem = (64 << 20) if is_v7 else (128 << 20)

    if phys_vmem <= (64 << 20):
        # v7x-class part: 64 MiB VMEM per TensorCore, 2 TCs per chip.
        # Leave ~8 MiB headroom for Mosaic internal scratch / DMA bookkeeping.
        vmem_limit = phys_vmem - (8 << 20)
        tm_default, th_default, n_cores = 512, 512, 2
    else:
        # v5e / v6e: 128 MiB VMEM, 1 TensorCore per chip.
        vmem_limit = min(phys_vmem - (24 << 20), 104 << 20)
        tm_default = 768 if is_v6 else 512
        th_default = 1024
        n_cores = 1
    return vmem_limit, tm_default, th_default, n_cores


def _tile_bytes(tm, th, e_pad, xb, wb, ob, use_scratch):
    """Worst-case per-step VMEM footprint (double-buffered pipeline)."""
    return (2 * tm * e_pad * xb                 # x tiles
            + 2 * e_pad * th * wb               # W1 tiles
            + 2 * th * e_pad * wb               # W2 tiles
            + 2 * tm * e_pad * ob               # out tiles
            + (tm * e_pad * 4 if use_scratch else 0)
            + 2 * tm * th * 4                   # GELU intermediates headroom
            + 4 * th + 4 * e_pad)               # biases


# ----------------------------------------------------------------- wrapper ----
def make_feed_forward(w1, b1, w2, b2, *, x_dtype=None, cast_to_bf16=False,
                      tm=None, th=None):
    """Pad / cast the weights once and return a callable `f(x) -> y`.

    w1: (E, 4E), b1: (4E,), w2: (4E, E), b2: (E,).  x has shape (..., E).
    """
    E, H = w1.shape
    assert w2.shape == (H, E) and b1.shape == (H,) and b2.shape == (E,)

    x_dtype = jnp.dtype(x_dtype) if x_dtype is not None else jnp.dtype(w1.dtype)
    w_dtype = jnp.dtype(jnp.bfloat16) if cast_to_bf16 else jnp.dtype(w1.dtype)
    xb = 2 if (cast_to_bf16 and x_dtype == jnp.float32) else x_dtype.itemsize
    wb = w_dtype.itemsize
    ob = x_dtype.itemsize
    use_scratch = x_dtype != jnp.float32

    vmem_limit, tm_d, th_d, n_cores = _chip_defaults()
    tm_max = int(tm) if tm is not None else tm_d
    th_eff = int(th) if th is not None else th_d

    E_pad = _round_up(E, 128)
    H_pad128 = _round_up(H, 128)
    th_eff = min(th_eff, H_pad128)

    # Weight-stationary path: if full padded W1+W2 fit in a quarter of the VMEM
    # budget, use a single H step with constant index maps so the weights are
    # DMA'd once and stay resident across all M tiles.
    if 2 * E_pad * H_pad128 * wb <= vmem_limit // 4:
        th_eff = H_pad128

    # Shrink tiles until the double-buffered working set fits the VMEM budget.
    budget = int(vmem_limit * 0.85)
    while tm_max > 128 and _tile_bytes(tm_max, th_eff, E_pad, xb, wb, ob,
                                       use_scratch) > budget:
        tm_max = max(128, _round_up(tm_max // 2, 128))
    while th_eff > 128 and _tile_bytes(tm_max, th_eff, E_pad, xb, wb, ob,
                                       use_scratch) > budget:
        th_eff = max(128, _round_up(th_eff // 2, 128))

    H_pad = _round_up(H, th_eff)

    def _pad2(a, rows, cols):
        pr, pc = rows - a.shape[0], cols - a.shape[1]
        return a if (pr == 0 and pc == 0) else jnp.pad(a, ((0, pr), (0, pc)))

    # Pad (skipped when already aligned) and cast once, outside the per-call path.
    w1p = _pad2(w1, E_pad, H_pad).astype(w_dtype)
    w2p = _pad2(w2, H_pad, E_pad).astype(w_dtype)
    b1p = _pad2(b1.reshape(1, H), 1, H_pad)
    b2p = _pad2(b2.reshape(1, E), 1, E_pad)

    def apply(x):
        assert x.shape[-1] == E, f"expected trailing dim {E}, got {x.shape}"
        out_dtype = x.dtype
        lead = x.shape[:-1]
        M = max(1, math.prod(lead))
        x2 = x.reshape(M, E)
        if cast_to_bf16 and x2.dtype == jnp.float32:
            x2 = x2.astype(jnp.bfloat16)

        tm_eff = min(tm_max, _round_up(M, 16))
        M_pad = _round_up(M, tm_eff)
        # On 2-TensorCore parts, make sure the parallel M axis has >= 2 tiles so
        # the second core does not idle on medium-M shapes.
        if n_cores >= 2 and M_pad // tm_eff < 2 and M >= 256:
            tm_eff = _round_up(-(-M // 2), 128)
            M_pad = _round_up(M, tm_eff)
        # TODO(synk): for tiny-M (decode) shapes on 2-core parts, split the H
        # reduction across cores with per-core partial accumulators instead.

        if x2.shape != (M_pad, E_pad):
            x2 = jnp.pad(x2, ((0, M_pad - M), (0, E_pad - E)))

        grid = (M_pad // tm_eff, H_pad // th_eff)

        in_specs = [
            pl.BlockSpec((tm_eff, E_pad), lambda i, j: (i, 0)),   # x row tile
            pl.BlockSpec((E_pad, th_eff), lambda i, j: (0, j)),   # W1 h-tile
            pl.BlockSpec((1, th_eff), lambda i, j: (0, j)),       # b1 h-tile
            pl.BlockSpec((th_eff, E_pad), lambda i, j: (j, 0)),   # W2 h-tile
            pl.BlockSpec((1, E_pad), lambda i, j: (0, 0)),        # b2 (finalize only)
        ]
        out_spec = pl.BlockSpec((tm_eff, E_pad), lambda i, j: (i, 0))

        if out_dtype == jnp.float32:
            kernel = _ffn_kernel_f32_out
            scratch = []
        else:
            kernel = _ffn_kernel_acc
            scratch = [pltpu.VMEM((tm_eff, E_pad), jnp.float32)]

        out = pl.pallas_call(
            kernel,
            out_shape=jax.ShapeDtypeStruct((M_pad, E_pad), out_dtype),
            grid_spec=pltpu.PrefetchScalarGridSpec(
                num_scalar_prefetch=0,
                grid=grid,
                in_specs=in_specs,
                out_specs=out_spec,
                scratch_shapes=scratch,
            ),
            compiler_params=pltpu.CompilerParams(
                dimension_semantics=("parallel", "arbitrary"),
                vmem_limit_bytes=vmem_limit,
            ),
        )(x2, w1p, b1p, w2p, b2p)

        return out[:M, :E].reshape(*lead, E)

    return apply


def feed_forward(x, w1, b1, w2, b2, **kwargs):
    """One-shot convenience wrapper (prefer make_feed_forward for repeated calls)."""
    return make_feed_forward(w1, b1, w2, b2, x_dtype=x.dtype, **kwargs)(x)


# --------------------------------------------------------------- reference ----
def _ref_ffn(x, w1, b1, w2, b2):
    h = jnp.einsum("...e,eh->...h", x, w1) + b1
    c = math.sqrt(2.0 / math.pi)
    g = 0.5 * h * (1.0 + jnp.tanh(c * (h + 0.044715 * h ** 3)))
    return jnp.einsum("...h,he->...e", g, w2) + b2


if __name__ == "__main__":
    # cfg['emb_dim'] = 32 -> hidden = 4 * 32 = 128
    B, S, E = 2, 8, 32
    H = 4 * E

    key = jax.random.PRNGKey(0)
    kx, k1, k2, k3, k4 = jax.random.split(key, 5)
    x = jax.random.normal(kx, (B, S, E), dtype=jnp.float32)

    # Deterministic Linear-style uniform init.
    bound1 = 1.0 / math.sqrt(E)
    w1 = jax.random.uniform(k1, (E, H), jnp.float32, -bound1, bound1)
    b1 = jax.random.uniform(k2, (H,), jnp.float32, -bound1, bound1)
    bound2 = 1.0 / math.sqrt(H)
    w2 = jax.random.uniform(k3, (H, E), jnp.float32, -bound2, bound2)
    b2 = jax.random.uniform(k4, (E,), jnp.float32, -bound2, bound2)

    ffn = make_feed_forward(w1, b1, w2, b2, x_dtype=x.dtype)  # weights prepped once
    out = jax.block_until_ready(ffn(x))

    ref = _ref_ffn(x, w1, b1, w2, b2)
    assert out.shape == (B, S, E)
    assert jnp.allclose(out, ref, atol=1e-5, rtol=1e-5), "mismatch vs reference"
    print("KERNEL_OK")
</pallas_src>

<mosaic_0001>
module attributes {stable_mosaic.version = 11 : i64} {
  func.func @_ffn_kernel_f32_out(%arg0: i32, %arg1: i32, %arg2: memref<16x128xf32, #tpu.memory_space<vmem>>, %arg3: memref<128x128xf32, #tpu.memory_space<vmem>>, %arg4: memref<1x128xf32, #tpu.memory_space<vmem>>, %arg5: memref<128x128xf32, #tpu.memory_space<vmem>>, %arg6: memref<1x128xf32, #tpu.memory_space<vmem>>, %arg7: memref<16x128xf32, #tpu.memory_space<vmem>>) attributes {dimension_semantics = [#tpu.dimension_semantics<parallel>, #tpu.dimension_semantics<arbitrary>], iteration_bounds = array<i64: 1, 1>, scalar_prefetch = 0 : i64, scratch_operands = 0 : i64, tpu.core_type = #tpu.core_type<tc>, window_params = [{transform_indices = @transform_0, window_bounds = array<i64: 16, 128>}, {transform_indices = @transform_1, window_bounds = array<i64: 128, 128>}, {transform_indices = @transform_2, window_bounds = array<i64: 1, 128>}, {transform_indices = @transform_3, window_bounds = array<i64: 128, 128>}, {pipeline_mode = #tpu.pipeline_mode<synchronous>, transform_indices = @transform_4, window_bounds = array<i64: 1, 128>}, {transform_indices = @transform_5, window_bounds = array<i64: 16, 128>}]} {
    %c0_i32 = arith.constant 0 : i32
    %0 = arith.cmpi eq, %arg1, %c0_i32 : i32
    %1 = arith.extui %0 : i1 to i32
    %c0_i32_0 = arith.constant 0 : i32
    %2 = arith.cmpi ne, %1, %c0_i32_0 : i32
    scf.if %2 {
      %cst_19 = arith.constant 0.000000e+00 : f32
      %29 = vector.broadcast %cst_19 : f32 to vector<16x128xf32>
      %c0_20 = arith.constant 0 : index
      %c0_21 = arith.constant 0 : index
      %30 = vector.load %arg7[%c0_20, %c0_21] : memref<16x128xf32, #tpu.memory_space<vmem>>, vector<16x128xf32>
      tpu.vector_store %arg7[%c0_20, %c0_21], %29 {strides = array<i32>} : memref<16x128xf32, #tpu.memory_space<vmem>>, vector<16x128xf32>,
    } else {
    }
    %c0 = arith.constant 0 : index
    %c0_1 = arith.constant 0 : index
    %3 = vector.load %arg7[%c0, %c0_1] : memref<16x128xf32, #tpu.memory_space<vmem>>, vector<16x128xf32>
    %c0_2 = arith.constant 0 : index
    %c0_3 = arith.constant 0 : index
    %4 = vector.load %arg2[%c0_2, %c0_3] : memref<16x128xf32, #tpu.memory_space<vmem>>, vector<16x128xf32>
    %c0_4 = arith.constant 0 : index
    %c0_5 = arith.constant 0 : index
    %5 = vector.load %arg3[%c0_4, %c0_5] : memref<128x128xf32, #tpu.memory_space<vmem>>, vector<128x128xf32>
    %cst = arith.constant dense<0.000000e+00> : vector<16x128xf32>
    %6 = tpu.matmul %4, %5, %cst {dimension_numbers = #tpu.dot_dimension_numbers<[1], [0], [0], [1], [0, 0, 1, 1], [], []>} : vector<16x128xf32>, vector<128x128xf32>, vector<16x128xf32> -> vector<16x128xf32>
    %c0_6 = arith.constant 0 : index
    %c0_7 = arith.constant 0 : index
    %7 = vector.load %arg4[%c0_6, %c0_7] : memref<1x128xf32, #tpu.memory_space<vmem>>, vector<1x128xf32>
    %8 = vector.broadcast %7 : vector<1x128xf32> to vector<16x128xf32>
    %9 = arith.addf %6, %8 : vector<16x128xf32>
    %10 = arith.mulf %9, %9 : vector<16x128xf32>
    %cst_8 = arith.constant 5.000000e-01 : f32
    %11 = vector.broadcast %cst_8 : f32 to vector<16x128xf32>
    %12 = arith.mulf %11, %9 : vector<16x128xf32>
    %cst_9 = arith.constant 0.0356774069 : f32
    %13 = vector.broadcast %cst_9 : f32 to vector<16x128xf32>
    %14 = arith.mulf %13, %10 : vector<16x128xf32>
    %cst_10 = arith.constant 0.797884583 : f32
    %15 = vector.broadcast %cst_10 : f32 to vector<16x128xf32>
    %16 = arith.addf %15, %14 : vector<16x128xf32>
    %17 = arith.mulf %9, %16 : vector<16x128xf32>
    %18 = math.tanh %17 : vector<16x128xf32>
    %cst_11 = arith.constant 1.000000e+00 : f32
    %19 = vector.broadcast %cst_11 : f32 to vector<16x128xf32>
    %20 = arith.addf %19, %18 : vector<16x128xf32>
    %21 = arith.mulf %12, %20 : vector<16x128xf32>
    %c0_12 = arith.constant 0 : index
    %c0_13 = arith.constant 0 : index
    %22 = vector.load %arg5[%c0_12, %c0_13] : memref<128x128xf32, #tpu.memory_space<vmem>>, vector<128x128xf32>
    %cst_14 = arith.constant dense<0.000000e+00> : vector<16x128xf32>
    %23 = tpu.matmul %21, %22, %cst_14 {dimension_numbers = #tpu.dot_dimension_numbers<[1], [0], [0], [1], [0, 0, 1, 1], [], []>} : vector<16x128xf32>, vector<128x128xf32>, vector<16x128xf32> -> vector<16x128xf32>
    %24 = arith.addf %3, %23 : vector<16x128xf32>
    %c0_15 = arith.constant 0 : index
    %c0_16 = arith.constant 0 : index
    %25 = vector.load %arg7[%c0_15, %c0_16] : memref<16x128xf32, #tpu.memory_space<vmem>>, vector<16x128xf32>
    tpu.vector_store %arg7[%c0_15, %c0_16], %24 {strides = array<i32>} : memref<16x128xf32, #tpu.memory_space<vmem>>, vector<16x128xf32>,
    %c0_i32_17 = arith.constant 0 : i32
    %26 = arith.cmpi eq, %arg1, %c0_i32_17 : i32
    %27 = arith.extui %26 : i1 to i32
    %c0_i32_18 = arith.constant 0 : i32
    %28 = arith.cmpi ne, %27, %c0_i32_18 : i32
    scf.if %28 {
      %c0_19 = arith.constant 0 : index
      %c0_20 = arith.constant 0 : index
      %29 = vector.load %arg7[%c0_19, %c0_20] : memref<16x128xf32, #tpu.memory_space<vmem>>, vector<16x128xf32>
      %c0_21 = arith.constant 0 : index
      %c0_22 = arith.constant 0 : index
      %30 = vector.load %arg6[%c0_21, %c0_22] : memref<1x128xf32, #tpu.memory_space<vmem>>, vector<1x128xf32>
      %31 = vector.broadcast %30 : vector<1x128xf32> to vector<16x128xf32>
      %32 = arith.addf %29, %31 : vector<16x128xf32>
      %c0_23 = arith.constant 0 : index
      %c0_24 = arith.constant 0 : index
      %33 = vector.load %arg7[%c0_23, %c0_24] : memref<16x128xf32, #tpu.memory_space<vmem>>, vector<16x128xf32>
      tpu.vector_store %arg7[%c0_23, %c0_24], %32 {strides = array<i32>} : memref<16x128xf32, #tpu.memory_space<vmem>>, vector<16x128xf32>,
    } else {
    }
    return
  }
  func.func @transform_0(%arg0: i32, %arg1: i32) -> (i32, i32) {
    %c0_i32 = arith.constant 0 : i32
    %c0_i32_0 = arith.constant 0 : i32
    return %arg0, %c0_i32 : i32, i32
  }
  func.func @transform_1(%arg0: i32, %arg1: i32) -> (i32, i32) {
    %c0_i32 = arith.constant 0 : i32
    %c0_i32_0 = arith.constant 0 : i32
    return %c0_i32, %arg1 : i32, i32
  }
  func.func @transform_2(%arg0: i32, %arg1: i32) -> (i32, i32) {
    %c0_i32 = arith.constant 0 : i32
    %c0_i32_0 = arith.constant 0 : i32
    return %c0_i32, %arg1 : i32, i32
  }
  func.func @transform_3(%arg0: i32, %arg1: i32) -> (i32, i32) {
    %c0_i32 = arith.constant 0 : i32
    %c0_i32_0 = arith.constant 0 : i32
    return %arg1, %c0_i32 : i32, i32
  }
  func.func @transform_4(%arg0: i32, %arg1: i32) -> (i32, i32) {
    %c0_i32 = arith.constant 0 : i32
    %c0_i32_0 = arith.constant 0 : i32
    %c0_i32_1 = arith.constant 0 : i32
    return %c0_i32, %c0_i32_0 : i32, i32
  }
  func.func @transform_5(%arg0: i32, %arg1: i32) -> (i32, i32) {
    %c0_i32 = arith.constant 0 : i32
    %c0_i32_0 = arith.constant 0 : i32
    return %arg0, %c0_i32 : i32, i32
  }
}

</mosaic_0001>

<llo_original>
// kernel: tpu_custom_call.1
$region0: #{tpu_custom_call.1}
  #allocation0 [shape = 'u32[]', space=smem, size = 0x4, offset = 0x4, fixed_abs, tag = 'smem constant byte address 0x4 - core index']
  #allocation1 [shape = 'u32[144,128]{1,0:T(1,128)}', space=vmem, size = 0x12000, scoped, tag = 'internal scratch']
  %s0 = inlined_call_operand.hbm [shape: f32[16,128], index: 0, kind: input, shape index: {}]
  %s1 = inlined_call_operand.hbm [shape: f32[128,128], index: 1, kind: input, shape index: {}]
  %s2 = inlined_call_operand.vmem [shape: f32[1,128], index: 2, kind: input, shape index: {}]
  %s3 = inlined_call_operand.hbm [shape: f32[128,128], index: 3, kind: input, shape index: {}]
  %s4 = inlined_call_operand.vmem [shape: f32[1,128], index: 4, kind: input, shape index: {}]
  %s5 = inlined_call_operand.hbm [shape: f32[16,128], index: 5, kind: output, shape index: {}]
  %s6 = sld [smem:[#allocation0]]
  $region50: #{tpu_custom_call.1} parent=0
    _
  %s8 = ssub.s32 1, %s6
  %s9 = scalar_select 0, %s8, %s6
  $region1: #{tpu_custom_call.1} parent=0
    #allocation2 [shape = 'u8[8192]{0}', space=vmem, size = 0x2000, scoped, tag = 'input window, operand 0, single buffered']
    #allocation3 [shape = 's32[1]{0}', space=sflag, size = 0x4, scoped, tag = 'scoped memory for tpu_custom_call.1']
    #allocation4 [shape = 's32[1]{0}', space=sflag, size = 0x4, scoped, tag = 'scoped memory for tpu_custom_call.1']
    #allocation5 [shape = 'u8[65536]{0}', space=vmem, size = 0x10000, scoped, tag = 'input window, operand 1, single buffered']
    #allocation6 [shape = 's32[1]{0}', space=sflag, size = 0x4, scoped, tag = 'scoped memory for tpu_custom_call.1']
    #allocation7 [shape = 'u8[65536]{0}', space=vmem, size = 0x10000, scoped, tag = 'input window, operand 3, single buffered']
    #allocation8 [shape = 'u8[8192]{0}', space=vmem, size = 0x2000, scoped, tag = 'output window, operand 0, single buffered']
    %10 = vsyncpa [#allocation3], 0
    %11 = vsyncpa [#allocation6], 0
    %12 = vsyncpa [#allocation4], 0
    // Predicated region
    $region2: #{tpu_custom_call.1} parent=1 // pred_check
      _
    $region3: #{tpu_custom_call.1} parent=1 // pred_check_branch
      %14 = sbr.rel (0) target = $region5
    $region4: #{tpu_custom_call.1} parent=1 // pred_region
      %s16 = ssub.s32 256, 256
      %17 = vsyncadd [#allocation3], %s16
      %s18 = sshll.u32 [#allocation2], 4
      %s19 = int_to_ptr.vmem [resolvable:$true] %s18
      %24 = dma.hbm_to_vmem [thread:$0]  %s0, 256, %s19, [#allocation3], 128, 128, 8
    $region5: #{tpu_custom_call.1} parent=1 // pred_fallthru
      _
    // Predicated region
    $region6: #{tpu_custom_call.1} parent=1 // pred_check
      _
    $region7: #{tpu_custom_call.1} parent=1 // pred_check_branch
      %26 = sbr.rel (0) target = $region9
    $region8: #{tpu_custom_call.1} parent=1 // pred_region
      %s28 = ssub.s32 2048, 2048
      %29 = vsyncadd [#allocation6], %s28
      %s30 = sshll.u32 [#allocation5], 4
      %s31 = int_to_ptr.vmem [resolvable:$true] %s30
      %36 = dma.hbm_to_vmem [thread:$0]  %s1, 2048, %s31, [#allocation6], 128, 128, 8
    $region9: #{tpu_custom_call.1} parent=1 // pred_fallthru
      _
    // Predicated region
    $region10: #{tpu_custom_call.1} parent=1 // pred_check
      _
    $region11: #{tpu_custom_call.1} parent=1 // pred_check_branch
      %38 = sbr.rel (0) target = $region13
    $region12: #{tpu_custom_call.1} parent=1 // pred_region
      _
    $region13: #{tpu_custom_call.1} parent=1 // pred_fallthru
      _
    // Predicated region
    $region14: #{tpu_custom_call.1} parent=1 // pred_check
      _
    $region15: #{tpu_custom_call.1} parent=1 // pred_check_branch
      %40 = sbr.rel (0) target = $region17
    $region16: #{tpu_custom_call.1} parent=1 // pred_region
      %s42 = ssub.s32 2048, 2048
      %43 = vsyncadd [#allocation6], %s42
      %s44 = sshll.u32 [#allocation7], 4
      %s45 = int_to_ptr.vmem [resolvable:$true] %s44
      %50 = dma.hbm_to_vmem [thread:$0]  %s3, 2048, %s45, [#allocation6], 128, 128, 8
    $region17: #{tpu_custom_call.1} parent=1 // pred_fallthru
      _
    // Predicated region
    $region18: #{tpu_custom_call.1} parent=1 // pred_check
      _
    $region19: #{tpu_custom_call.1} parent=1 // pred_check_branch
      %52 = sbr.rel (0) target = $region21
    $region20: #{tpu_custom_call.1} parent=1 // pred_region
      _
    $region21: #{tpu_custom_call.1} parent=1 // pred_fallthru
      _
    // Predicated region
    $region22: #{tpu_custom_call.1} parent=1 // pred_check
      _
    $region23: #{tpu_custom_call.1} parent=1 // pred_check_branch
      %54 = sbr.rel (0) target = $region25
    $region24: #{tpu_custom_call.1} parent=1 // pred_region
      %55 = dma.done [#allocation3], 256
    $region25: #{tpu_custom_call.1} parent=1 // pred_fallthru
      _
    // Predicated region
    $region26: #{tpu_custom_call.1} parent=1 // pred_check
      _
    $region27: #{tpu_custom_call.1} parent=1 // pred_check_branch
      %57 = sbr.rel (0) target = $region29
    $region28: #{tpu_custom_call.1} parent=1 // pred_region
      %58 = dma.done [#allocation6], 2048
    $region29: #{tpu_custom_call.1} parent=1 // pred_fallthru
      _
    // Predicated region
    $region30: #{tpu_custom_call.1} parent=1 // pred_check
      _
    $region31: #{tpu_custom_call.1} parent=1 // pred_check_branch
      %60 = sbr.rel (0) target = $region33
    $region32: #{tpu_custom_call.1} parent=1 // pred_region
      %61 = dma.done [#allocation6], 2048
    $region33: #{tpu_custom_call.1} parent=1 // pred_fallthru
      _
    %p62 = scmp.eq.s32.totalorder 0, 0
    // Predicated region
    $region34: #{tpu_custom_call.1} parent=1 // pred_check
      %p63 = pneg %p62
    $region35: #{tpu_custom_call.1} parent=1 // pred_check_branch
      %65 = sbr.rel (%p63) target = $region37
    $region36: #{tpu_custom_call.1} parent=1 // pred_region
      %66 = vst [vmem:[#allocation8] sm:$0xff] 0.0
      %67 = vst [vmem:[#allocation8 + $0x8] sm:$0xff] 0.0
    $region37: #{tpu_custom_call.1} parent=1 // pred_fallthru
      _
    %v68 = vld [vmem:[#allocation8] sm:$0xff]
    %v69 = vld [vmem:[#allocation8 + $0x8] sm:$0xff]
    %v70 = vld [vmem:[#allocation2] sm:$0xff]
    %v71 = vld [vmem:[#allocation2 + $0x8] sm:$0xff]
    %v72 = vld [vmem:[#allocation5] sm:$0xff]
    %v73 = vld [vmem:[#allocation5 + $0x8] sm:$0xff]
    %v74 = vld [vmem:[#allocation5 + $0x10] sm:$0xff]
    %v75 = vld [vmem:[#allocation5 + $0x18] sm:$0xff]
    %v76 = vld [vmem:[#allocation5 + $0x20] sm:$0xff]
    %v77 = vld [vmem:[#allocation5 + $0x28] sm:$0xff]
    %v78 = vld [vmem:[#allocation5 + $0x30] sm:$0xff]
    %v79 = vld [vmem:[#allocation5 + $0x38] sm:$0xff]
    %v80 = vld [vmem:[#allocation5 + $0x40] sm:$0xff]
    %v81 = vld [vmem:[#allocation5 + $0x48] sm:$0xff]
    %v82 = vld [vmem:[#allocation5 + $0x50] sm:$0xff]
    %v83 = vld [vmem:[#allocation5 + $0x58] sm:$0xff]
    %v84 = vld [vmem:[#allocation5 + $0x60] sm:$0xff]
    %v85 = vld [vmem:[#allocation5 + $0x68] sm:$0xff]
    %v86 = vld [vmem:[#allocation5 + $0x70] sm:$0xff]
    %v87 = vld [vmem:[#allocation5 + $0x78] sm:$0xff]
    %v88 = vld [vmem:[%s2] sm:$0x1]
    %v90 = vlaneseq
    %v91 = vshrl.u32 %v90, 7
    %v92 = vsub.s32 0, %v91
    %v93 = vrot.slane %v88, %v92
    %95 = vmatprep.subr.mxu0 0.0
    %96 = vmatpush1.msra.mxu0 %v87
    %97 = vmatprep.subr.mxu0 0.0
    %98 = vmatpush1.msra.mxu0 %v86
    %99 = vmatprep.subr.mxu0 0.0
    %100 = vmatpush1.msra.mxu0 %v85
    %101 = vmatprep.subr.mxu0 0.0
    %102 = vmatpush1.msra.mxu0 %v84
    %103 = vmatprep.subr.mxu0 0.0
    %104 = vmatpush1.msra.mxu0 %v83
    %105 = vmatprep.subr.mxu0 0.0
    %106 = vmatpush1.msra.mxu0 %v82
    %107 = vmatprep.subr.mxu0 0.0
    %108 = vmatpush1.msra.mxu0 %v81
    %109 = vmatprep.subr.mxu0 0.0
    %110 = vmatpush1.msra.mxu0 %v80
    %111 = vmatprep.subr.mxu0 0.0
    %112 = vmatpush1.msra.mxu0 %v79
    %113 = vmatprep.subr.mxu0 0.0
    %114 = vmatpush1.msra.mxu0 %v78
    %115 = vmatprep.subr.mxu0 0.0
    %116 = vmatpush1.msra.mxu0 %v77
    %117 = vmatprep.subr.mxu0 0.0
    %118 = vmatpush1.msra.mxu0 %v76
    %119 = vmatprep.subr.mxu0 0.0
    %120 = vmatpush1.msra.mxu0 %v75
    %121 = vmatprep.subr.mxu0 0.0
    %122 = vmatpush1.msra.mxu0 %v74
    %123 = vmatprep.subr.mxu0 0.0
    %124 = vmatpush1.msra.mxu0 %v73
    %125 = vmatprep.subr.mxu0 0.0
    %126 = vmatpush1.msra.mxu0 %v72
    %127 = vmatprep.subr.mxu0 0.0
    %128 = vmatpush2.msra.mxu0 0.0
    %129 = vmatprep.subr.mxu0 0.0
    %130 = vmatpush2.msra.mxu0 0.0
    %131 = vmatprep.subr.mxu0 0.0
    %132 = vmatpush2.msra.mxu0 0.0
    %133 = vmatprep.subr.mxu0 0.0
    %134 = vmatpush2.msra.mxu0 0.0
    %135 = vmatprep.subr.mxu0 0.0
    %136 = vmatpush2.msra.mxu0 0.0
    %137 = vmatprep.subr.mxu0 0.0
    %138 = vmatpush2.msra.mxu0 0.0
    %139 = vmatprep.subr.mxu0 0.0
    %140 = vmatpush2.msra.mxu0 0.0
    %141 = vmatprep.subr.mxu0 0.0
    %142 = vmatpush2.msra.mxu0 0.0
    %143 = vmatprep.subr.mxu0 0.0
    %144 = vmatpush2.msra.mxu0 0.0
    %145 = vmatprep.subr.mxu0 0.0
    %146 = vmatpush2.msra.mxu0 0.0
    %147 = vmatprep.subr.mxu0 0.0
    %148 = vmatpush2.msra.mxu0 0.0
    %149 = vmatprep.subr.mxu0 0.0
    %150 = vmatpush2.msra.mxu0 0.0
    %151 = vmatprep.subr.mxu0 0.0
    %152 = vmatpush2.msra.mxu0 0.0
    %153 = vmatprep.subr.mxu0 0.0
    %154 = vmatpush2.msra.mxu0 0.0
    %155 = vmatprep.subr.mxu0 0.0
    %156 = vmatpush2.msra.mxu0 0.0
    %157 = vmatprep.subr.mxu0 0.0
    %158 = vmatpush2.msra.mxu0 0.0
    %159 = vmatprep.mubr.f32.mxu0 0.0
    %160 = vmatmul.mubr.f32.gmra.mxu0 %v70
    %v161 = vpop.f32.mrf.mxu0
    %v162 = vadd.f32 %v93, %v161
    %v163 = vpop.f32.mrf.mxu0
    %164 = vmatprep.mubr.f32.mxu0 0.0
    %165 = vmatmul.mubr.f32.gmra.mxu0 %v71
    %v166 = vpop.f32.mrf.mxu0
    %v167 = vadd.f32 %v93, %v166
    %v168 = vpop.f32.mrf.mxu0
    %169 = vdwg.mxu0
    %v170 = vmul.f32 %v162, %v162
    %v171 = vmul.f32 %v167, %v167
    %v172 = vmul.f32 %v162, 0.5
    %v173 = vmul.f32 %v167, 0.5
    %v174 = vmul.f32 %v170, 0.035677407
    %v175 = vmul.f32 %v171, 0.035677407
    %v176 = vadd.f32 %v174, 0.7978846
    %v177 = vadd.f32 %v175, 0.7978846
    %v178 = vmul.f32 %v162, %v176
    %v179 = vmul.f32 %v167, %v177
    %v180 = vtanh.pop %v178
    %v181 = vtanh.pop %v179
    %v182 = vadd.f32 %v180, 1.0
    %v183 = vadd.f32 %v181, 1.0
    %v184 = vmul.f32 %v172, %v182
    %v185 = vmul.f32 %v173, %v183
    %v186 = vld [vmem:[#allocation7] sm:$0xff]
    %v187 = vld [vmem:[#allocation7 + $0x8] sm:$0xff]
    %v188 = vld [vmem:[#allocation7 + $0x10] sm:$0xff]
    %v189 = vld [vmem:[#allocation7 + $0x18] sm:$0xff]
    %v190 = vld [vmem:[#allocation7 + $0x20] sm:$0xff]
    %v191 = vld [vmem:[#allocation7 + $0x28] sm:$0xff]
    %v192 = vld [vmem:[#allocation7 + $0x30] sm:$0xff]
    %v193 = vld [vmem:[#allocation7 + $0x38] sm:$0xff]
    %v194 = vld [vmem:[#allocation7 + $0x40] sm:$0xff]
    %v195 = vld [vmem:[#allocation7 + $0x48] sm:$0xff]
    %v196 = vld [vmem:[#allocation7 + $0x50] sm:$0xff]
    %v197 = vld [vmem:[#allocation7 + $0x58] sm:$0xff]
    %v198 = vld [vmem:[#allocation7 + $0x60] sm:$0xff]
    %v199 = vld [vmem:[#allocation7 + $0x68] sm:$0xff]
    %v200 = vld [vmem:[#allocation7 + $0x70] sm:$0xff]
    %v201 = vld [vmem:[#allocation7 + $0x78] sm:$0xff]
    %202 = vmatprep.subr.mxu0 0.0
    %203 = vmatpush1.msra.mxu0 %v201
    %204 = vmatprep.subr.mxu0 0.0
    %205 = vmatpush1.msra.mxu0 %v200
    %206 = vmatprep.subr.mxu0 0.0
    %207 = vmatpush1.msra.mxu0 %v199
    %208 = vmatprep.subr.mxu0 0.0
    %209 = vmatpush1.msra.mxu0 %v198
    %210 = vmatprep.subr.mxu0 0.0
    %211 = vmatpush1.msra.mxu0 %v197
    %212 = vmatprep.subr.mxu0 0.0
    %213 = vmatpush1.msra.mxu0 %v196
    %214 = vmatprep.subr.mxu0 0.0
    %215 = vmatpush1.msra.mxu0 %v195
    %216 = vmatprep.subr.mxu0 0.0
    %217 = vmatpush1.msra.mxu0 %v194
    %218 = vmatprep.subr.mxu0 0.0
    %219 = vmatpush1.msra.mxu0 %v193
    %220 = vmatprep.subr.mxu0 0.0
    %221 = vmatpush1.msra.mxu0 %v192
    %222 = vmatprep.subr.mxu0 0.0
    %223 = vmatpush1.msra.mxu0 %v191
    %224 = vmatprep.subr.mxu0 0.0
    %225 = vmatpush1.msra.mxu0 %v190
    %226 = vmatprep.subr.mxu0 0.0
    %227 = vmatpush1.msra.mxu0 %v189
    %228 = vmatprep.subr.mxu0 0.0
    %229 = vmatpush1.msra.mxu0 %v188
    %230 = vmatprep.subr.mxu0 0.0
    %231 = vmatpush1.msra.mxu0 %v187
    %232 = vmatprep.subr.mxu0 0.0
    %233 = vmatpush1.msra.mxu0 %v186
    %234 = vmatprep.subr.mxu0 0.0
    %235 = vmatpush2.msra.mxu0 0.0
    %236 = vmatprep.subr.mxu0 0.0
    %237 = vmatpush2.msra.mxu0 0.0
    %238 = vmatprep.subr.mxu0 0.0
    %239 = vmatpush2.msra.mxu0 0.0
    %240 = vmatprep.subr.mxu0 0.0
    %241 = vmatpush2.msra.mxu0 0.0
    %242 = vmatprep.subr.mxu0 0.0
    %243 = vmatpush2.msra.mxu0 0.0
    %244 = vmatprep.subr.mxu0 0.0
    %245 = vmatpush2.msra.mxu0 0.0
    %246 = vmatprep.subr.mxu0 0.0
    %247 = vmatpush2.msra.mxu0 0.0
    %248 = vmatprep.subr.mxu0 0.0
    %249 = vmatpush2.msra.mxu0 0.0
    %250 = vmatprep.subr.mxu0 0.0
    %251 = vmatpush2.msra.mxu0 0.0
    %252 = vmatprep.subr.mxu0 0.0
    %253 = vmatpush2.msra.mxu0 0.0
    %254 = vmatprep.subr.mxu0 0.0
    %255 = vmatpush2.msra.mxu0 0.0
    %256 = vmatprep.subr.mxu0 0.0
    %257 = vmatpush2.msra.mxu0 0.0
    %258 = vmatprep.subr.mxu0 0.0
    %259 = vmatpush2.msra.mxu0 0.0
    %260 = vmatprep.subr.mxu0 0.0
    %261 = vmatpush2.msra.mxu0 0.0
    %262 = vmatprep.subr.mxu0 0.0
    %263 = vmatpush2.msra.mxu0 0.0
    %264 = vmatprep.subr.mxu0 0.0
    %265 = vmatpush2.msra.mxu0 0.0
    %266 = vmatprep.mubr.f32.mxu0 0.0
    %267 = vmatmul.mubr.f32.gmra.mxu0 %v184
    %v268 = vpop.f32.mrf.mxu0
    %v269 = vadd.f32 0.0, %v268
    %v270 = vpop.f32.mrf.mxu0
    %271 = vmatprep.mubr.f32.mxu0 0.0
    %272 = vmatmul.mubr.f32.gmra.mxu0 %v185
    %v273 = vpop.f32.mrf.mxu0
    %v274 = vadd.f32 0.0, %v273
    %v275 = vpop.f32.mrf.mxu0
    %276 = vdwg.mxu0
    %v277 = vadd.f32 %v68, %v269
    %v278 = vadd.f32 %v69, %v274
    %279 = vst [vmem:[#allocation8] sm:$0xff] %v277
    %280 = vst [vmem:[#allocation8 + $0x8] sm:$0xff] %v278
    // Predicated region
    $region38: #{tpu_custom_call.1} parent=1 // pred_check
      %p281 = pneg %p62
    $region39: #{tpu_custom_call.1} parent=1 // pred_check_branch
      %283 = sbr.rel (%p281) target = $region41
    $region40: #{tpu_custom_call.1} parent=1 // pred_region
      %v284 = vld [vmem:[#allocation8] sm:$0xff]
      %v285 = vld [vmem:[#allocation8 + $0x8] sm:$0xff]
      %v286 = vld [vmem:[%s4] sm:$0x1]
      %v288 = vlaneseq
      %v289 = vshrl.u32 %v288, 7
      %v290 = vsub.s32 0, %v289
      %v291 = vrot.slane %v286, %v290
      %v293 = vadd.f32 %v284, %v291
      %v294 = vadd.f32 %v285, %v291
      %295 = vst [vmem:[#allocation8] sm:$0xff] %v293
      %296 = vst [vmem:[#allocation8 + $0x8] sm:$0xff] %v294
    $region41: #{tpu_custom_call.1} parent=1 // pred_fallthru
      _
    // Predicated region
    $region42: #{tpu_custom_call.1} parent=1 // pred_check
      _
    $region43: #{tpu_custom_call.1} parent=1 // pred_check_branch
      %298 = sbr.rel (0) target = $region45
    $region44: #{tpu_custom_call.1} parent=1 // pred_region
      %s300 = ssub.s32 256, 256
      %301 = vsyncadd [#allocation4], %s300
      %s302 = sshll.u32 [#allocation8], 4
      %s303 = int_to_ptr.vmem [resolvable:$true] %s302
      %308 = dma.vmem_to_hbm [thread:$0]  %s303, 256, %s5, [#allocation4], 128, 128, 8
    $region45: #{tpu_custom_call.1} parent=1 // pred_fallthru
      _
    // Predicated region
    $region46: #{tpu_custom_call.1} parent=1 // pred_check
      _
    $region47: #{tpu_custom_call.1} parent=1 // pred_check_branch
      %310 = sbr.rel (0) target = $region49
    $region48: #{tpu_custom_call.1} parent=1 // pred_region
      %311 = dma.done [#allocation4], 256
    $region49: #{tpu_custom_call.1} parent=1 // pred_fallthru
      _
    %312 = vsyncpa [#allocation3], 1
    %313 = vsyncpa [#allocation6], 1
    %314 = vsyncpa [#allocation4], 1

</llo_original>
